<compile_context>
chip_gen: v6e
topology: v6e:2x2x1
jax: 0.10.0
libtpu: 0.0.40
codegen_flags: <defaults>
</compile_context>

<pallas_src>
import jax
import jax.numpy as jnp
from jax.experimental import pallas as pl
from jax.experimental.pallas import tpu as pltpu

LANE = 128
SUBLANE = 8
_MIB = 1024 * 1024
_EPS = 1e-5


def _round_up(a: int, b: int) -> int:
    return ((a + b - 1) // b) * b


def _vmem_capacity_bytes() -> int:
    """Physical VMEM of this chip generation; conservative 64 MiB (v7x) if unknown."""
    try:
        info = pltpu.get_tpu_info()
        return int(getattr(info, "vmem_capacity_bytes", 64 * _MIB))
    except Exception:
        return 64 * _MIB


def _spec(shape, index_map, use_buffered, buffers=None):
    """BlockSpec with an explicit buffer count (Buffered(1) for grid-invariant operands).
    Falls back to the default double-buffered spec if pipeline_mode is unsupported."""
    if use_buffered and buffers is not None:
        try:
            return pl.BlockSpec(shape, index_map, pipeline_mode=pl.Buffered(buffers))
        except Exception:
            pass
    return pl.BlockSpec(shape, index_map)


def _make_kernel(seq_len: int, inner_th: int):
    """Fused LayerNorm(seq) -> Linear(S,H) -> ReLU -> Linear(H,S) -> + residual."""

    def kernel(x_ref, gamma_ref, beta_ref, w1_ref, b1_ref, w2_ref, b2_ref,
               o_ref, xn_ref, acc_ref):
        h_idx = pl.program_id(1)

        @pl.when(h_idx == 0)
        def _():
            # LayerNorm over the TRUE seq_len.  One-pass stats (E[x^2] - mean^2) so the
            # zero-padded lanes of x contribute nothing; gamma/beta are zero-padded so the
            # padded lanes of the normalized input are exactly zero.
            x = x_ref[...].astype(jnp.float32)
            inv_s = jnp.float32(1.0 / seq_len)
            mean = jnp.sum(x, axis=-1, keepdims=True) * inv_s
            ex2 = jnp.sum(x * x, axis=-1, keepdims=True) * inv_s
            var = ex2 - mean * mean
            scale = gamma_ref[...].astype(jnp.float32) * jax.lax.rsqrt(var + _EPS)
            shift = beta_ref[...].astype(jnp.float32) - mean * scale
            xn_ref[...] = (x * scale + shift).astype(xn_ref.dtype)
            acc_ref[...] = jnp.zeros_like(acc_ref)

        # Process this grid step's weight block in chunks of width inner_th so the live
        # hidden activation stays (TILE_M, inner_th) instead of (TILE_M, H).
        xn = xn_ref[...]
        acc = acc_ref[...]
        n_inner = w1_ref.shape[1] // inner_th          # static
        for c in range(n_inner):
            lo = c * inner_th
            w1c = w1_ref[:, lo:lo + inner_th]
            b1c = b1_ref[:, lo:lo + inner_th].astype(jnp.float32)
            w2c = w2_ref[lo:lo + inner_th, :]
            h = jnp.dot(xn, w1c, preferred_element_type=jnp.float32)
            h = jnp.maximum(h + b1c, 0.0)
            acc = acc + jnp.dot(h.astype(w2c.dtype), w2c,
                                preferred_element_type=jnp.float32)
        acc_ref[...] = acc

        @pl.when(h_idx == pl.num_programs(1) - 1)
        def _():
            # TODO(synk): dropout is identity at inference; training-mode dropout not implemented.
            y = acc_ref[...] + b2_ref[...].astype(jnp.float32) \
                + x_ref[...].astype(jnp.float32)       # residual add in f32
            o_ref[...] = y.astype(o_ref.dtype)

    return kernel


def prepare_params(gamma, beta, w1, b1, w2, b2, *, matmul_dtype=jnp.bfloat16):
    """One-time parameter prep: pad seq/hidden dims to multiples of 128 (lane-dense MXU and
    stores) and cast matmul weights to bf16.  Call once and reuse across forward calls."""
    S, H = w1.shape
    s_pad = _round_up(S, LANE)
    h_pad = _round_up(H, LANE)

    def pad_row(v, cols):
        v = jnp.asarray(v, jnp.float32).reshape(1, -1)
        return jnp.pad(v, ((0, 0), (0, cols - v.shape[1])))

    def pad_mat(m, rows, cols, dtype):
        m = jnp.asarray(m, jnp.float32)
        m = jnp.pad(m, ((0, rows - m.shape[0]), (0, cols - m.shape[1])))
        return m.astype(dtype)

    params = dict(
        gamma=pad_row(gamma, s_pad),
        beta=pad_row(beta, s_pad),
        w1=pad_mat(w1, s_pad, h_pad, matmul_dtype),
        b1=pad_row(b1, h_pad),
        w2=pad_mat(w2, h_pad, s_pad, matmul_dtype),
        b2=pad_row(b2, s_pad),
    )
    meta = dict(seq_len=S, hidden=H, s_pad=s_pad, h_pad=h_pad)
    return params, meta


def feedforward(x, params, meta, *, tile_m=512, hidden_chunk=512, force_stream=False):
    """x: (B, C, S) float32 -> (B, C, S).  params/meta come from prepare_params (call once)."""
    B, C, S = x.shape
    assert S == meta["seq_len"], "x last dim must match the prepared seq_len"
    s_pad, h_pad = meta["s_pad"], meta["h_pad"]
    M = B * C

    # Row tiling: multiple of 8; prefer >= 2 tiles when M allows so the "parallel" M axis
    # can shard across v7x's two TensorCores (no effect on single-TC v5e/v6e).
    tile = min(int(tile_m), _round_up(M, SUBLANE))
    if M <= tile and M >= 2 * SUBLANE:
        tile = _round_up((M + 1) // 2, SUBLANE)
    tile = max(SUBLANE, _round_up(tile, SUBLANE))
    m_pad = _round_up(M, tile)
    grid_m = m_pad // tile

    # Hidden chunk width: bounds the live (TILE_M, chunk) activation; multiple of 128.
    inner_th = h_pad
    for cand in (int(hidden_chunk), 256, LANE):
        if cand <= h_pad and h_pad % cand == 0:
            inner_th = cand
            break

    # Resident vs streamed weights (generation aware via the physical VMEM capacity).
    cap = _vmem_capacity_bytes()
    bw = jnp.dtype(params["w1"].dtype).itemsize
    resident_weight_bytes = 2 * s_pad * h_pad * bw
    stream = bool(force_stream) or (resident_weight_bytes > cap // 2)
    if stream:
        wblock_h = inner_th      # stream weight chunks over the grid's hidden axis
        w_buf = None             # default double-buffering: overlap weight DMA with MXU
        weight_bufs = 2
    else:
        wblock_h = h_pad         # weights fully VMEM resident
        w_buf = 1                # constant index -> single buffer, no VMEM waste
        weight_bufs = 1
    grid_h = h_pad // wblock_h

    # Input padding: rows to the tile, lanes to s_pad (padded rows/lanes are dropped below).
    x2 = x.reshape(M, S)
    if (m_pad, s_pad) != (M, S):
        x2 = jnp.pad(x2, ((0, m_pad - M), (0, s_pad - S)))

    # VMEM budget from the actual tiles / buffer counts, capped at physical VMEM - headroom.
    est = (
        4 * tile * s_pad * 4                                                  # x + out tiles (2x buf, f32)
        + 3 * SUBLANE * s_pad * 4                                             # gamma, beta, b2 (1x buf)
        + weight_bufs * (2 * s_pad * wblock_h * bw + SUBLANE * wblock_h * 4)  # w1, w2, b1 blocks
        + tile * s_pad * (bw + 4)                                             # xn + acc scratch
        + tile * inner_th * (4 + bw)                                          # live hidden chunk
        + 3 * tile * s_pad * 4                                                # LayerNorm temporaries
    )
    vmem_limit = int(min(max(est + 8 * _MIB, 32 * _MIB), cap - 8 * _MIB))

    kernel = _make_kernel(S, inner_th)

    def build(use_buffered):
        grid_spec = pltpu.PrefetchScalarGridSpec(
            num_scalar_prefetch=0,
            grid=(grid_m, grid_h),
            in_specs=[
                pl.BlockSpec((tile, s_pad), lambda i, h: (i, 0)),                   # x row tile
                _spec((1, s_pad), lambda i, h: (0, 0), use_buffered, 1),            # gamma
                _spec((1, s_pad), lambda i, h: (0, 0), use_buffered, 1),            # beta
                _spec((s_pad, wblock_h), lambda i, h: (0, h), use_buffered, w_buf),  # w1
                _spec((1, wblock_h), lambda i, h: (0, h), use_buffered, w_buf),      # b1
                _spec((wblock_h, s_pad), lambda i, h: (h, 0), use_buffered, w_buf),  # w2
                _spec((1, s_pad), lambda i, h: (0, 0), use_buffered, 1),            # b2
            ],
            out_specs=pl.BlockSpec((tile, s_pad), lambda i, h: (i, 0)),
            scratch_shapes=[
                pltpu.VMEM((tile, s_pad), params["w1"].dtype),   # normalized activations (bf16)
                pltpu.VMEM((tile, s_pad), jnp.float32),          # second-matmul f32 accumulator
            ],
        )
        return pl.pallas_call(
            kernel,
            out_shape=jax.ShapeDtypeStruct((m_pad, s_pad), x.dtype),
            grid_spec=grid_spec,
            compiler_params=pltpu.CompilerParams(
                dimension_semantics=("parallel", "arbitrary"),
                vmem_limit_bytes=vmem_limit,
            ),
        )

    args = (x2, params["gamma"], params["beta"], params["w1"], params["b1"],
            params["w2"], params["b2"])
    try:
        out = build(use_buffered=True)(*args)
    except Exception:
        # TODO(synk): pipeline_mode=pl.Buffered unsupported in this jax build; fall back to
        # default double-buffering (correct, just more VMEM for the invariant operands).
        out = build(use_buffered=False)(*args)

    return out[:M, :S].reshape(B, C, S)


def reference(x, gamma, beta, w1, b1, w2, b2):
    """Plain-JAX f32 reference (inference: dropout = identity)."""
    mean = jnp.mean(x, axis=-1, keepdims=True)
    var = jnp.mean((x - mean) ** 2, axis=-1, keepdims=True)
    xn = (x - mean) / jnp.sqrt(var + _EPS) * gamma + beta
    h = jnp.maximum(xn @ w1 + b1, 0.0)
    return h @ w2 + b2 + x


if __name__ == "__main__":
    def run_case(batch, enc_in, seq_len, *, force_stream=False, fold=0):
        hidden = 4 * seq_len
        keys = jax.random.split(jax.random.fold_in(jax.random.PRNGKey(0), fold), 7)
        x = jax.random.normal(keys[0], (batch, enc_in, seq_len), dtype=jnp.float32)
        gamma = 1.0 + 0.1 * jax.random.normal(keys[1], (seq_len,), dtype=jnp.float32)
        beta = 0.1 * jax.random.normal(keys[2], (seq_len,), dtype=jnp.float32)
        w1 = jax.random.normal(keys[3], (seq_len, hidden), dtype=jnp.float32) / jnp.sqrt(seq_len)
        b1 = 0.1 * jax.random.normal(keys[4], (hidden,), dtype=jnp.float32)
        w2 = jax.random.normal(keys[5], (hidden, seq_len), dtype=jnp.float32) / jnp.sqrt(hidden)
        b2 = 0.1 * jax.random.normal(keys[6], (seq_len,), dtype=jnp.float32)

        params, meta = prepare_params(gamma, beta, w1, b1, w2, b2)   # one-time cast/pad
        out = jax.block_until_ready(feedforward(x, params, meta, force_stream=force_stream))
        ref = reference(x, gamma, beta, w1, b1, w2, b2)
        assert out.shape == x.shape
        err = float(jnp.max(jnp.abs(out - ref)))
        tol = 3e-2 * (1.0 + float(jnp.max(jnp.abs(ref))))   # bf16 MXU operands, f32 accumulation
        assert err <= tol, f"mismatch vs reference: max_err={err} tol={tol}"

    # Module-consistent tiny shapes (seq_len=8 -> hidden=32); fully-resident weight path.
    run_case(2, 4, 8, fold=0)
    # Row padding + two row tiles (exercises the "parallel" M axis and padded rows).
    run_case(2, 9, 8, fold=1)
    # Larger seq_len with forced hidden-axis weight streaming (the v7x large-S path).
    run_case(1, 8, 256, force_stream=True, fold=2)

    print("KERNEL_OK")
</pallas_src>

<mosaic_0001>
module attributes {stable_mosaic.version = 11 : i64} {
  func.func @kernel(%arg0: i32, %arg1: i32, %arg2: memref<8x128xf32, #tpu.memory_space<vmem>>, %arg3: memref<1x128xf32, #tpu.memory_space<vmem>>, %arg4: memref<1x128xf32, #tpu.memory_space<vmem>>, %arg5: memref<128x128xbf16, #tpu.memory_space<vmem>>, %arg6: memref<1x128xf32, #tpu.memory_space<vmem>>, %arg7: memref<128x128xbf16, #tpu.memory_space<vmem>>, %arg8: memref<1x128xf32, #tpu.memory_space<vmem>>, %arg9: memref<8x128xf32, #tpu.memory_space<vmem>>, %arg10: memref<8x128xbf16, #tpu.memory_space<vmem>>, %arg11: memref<8x128xf32, #tpu.memory_space<vmem>>) attributes {dimension_semantics = [#tpu.dimension_semantics<parallel>, #tpu.dimension_semantics<arbitrary>], iteration_bounds = array<i64: 1, 1>, scalar_prefetch = 0 : i64, scratch_operands = 2 : i64, tpu.core_type = #tpu.core_type<tc>, window_params = [{transform_indices = @transform_0, window_bounds = array<i64: 8, 128>}, {pipeline_mode = #tpu.pipeline_mode<synchronous>, transform_indices = @transform_1, window_bounds = array<i64: 1, 128>}, {pipeline_mode = #tpu.pipeline_mode<synchronous>, transform_indices = @transform_2, window_bounds = array<i64: 1, 128>}, {pipeline_mode = #tpu.pipeline_mode<synchronous>, transform_indices = @transform_3, window_bounds = array<i64: 128, 128>}, {pipeline_mode = #tpu.pipeline_mode<synchronous>, transform_indices = @transform_4, window_bounds = array<i64: 1, 128>}, {pipeline_mode = #tpu.pipeline_mode<synchronous>, transform_indices = @transform_5, window_bounds = array<i64: 128, 128>}, {pipeline_mode = #tpu.pipeline_mode<synchronous>, transform_indices = @transform_6, window_bounds = array<i64: 1, 128>}, {transform_indices = @transform_7, window_bounds = array<i64: 8, 128>}]} {
    %c0_i32 = arith.constant 0 : i32
    %0 = arith.cmpi eq, %arg1, %c0_i32 : i32
    %1 = arith.extui %0 : i1 to i32
    %c0_i32_0 = arith.constant 0 : i32
    %2 = arith.cmpi ne, %1, %c0_i32_0 : i32
    scf.if %2 {
      %c0_16 = arith.constant 0 : index
      %c0_17 = arith.constant 0 : index
      %20 = vector.load %arg2[%c0_16, %c0_17] : memref<8x128xf32, #tpu.memory_space<vmem>>, vector<8x128xf32>
      %cst_18 = arith.constant dense<0.000000e+00> : vector<8xf32>
      %21 = vector.multi_reduction <add>, %20, %cst_18 [1] : vector<8x128xf32> to vector<8xf32>
      %22 = vector.shape_cast %21 : vector<8xf32> to vector<8x1xf32>
      %cst_19 = arith.constant 1.250000e-01 : f32
      %23 = vector.broadcast %cst_19 : f32 to vector<8x1xf32>
      %24 = arith.mulf %22, %23 : vector<8x1xf32>
      %25 = arith.mulf %20, %20 : vector<8x128xf32>
      %cst_20 = arith.constant dense<0.000000e+00> : vector<8xf32>
      %26 = vector.multi_reduction <add>, %25, %cst_20 [1] : vector<8x128xf32> to vector<8xf32>
      %27 = vector.shape_cast %26 : vector<8xf32> to vector<8x1xf32>
      %cst_21 = arith.constant 1.250000e-01 : f32
      %28 = vector.broadcast %cst_21 : f32 to vector<8x1xf32>
      %29 = arith.mulf %27, %28 : vector<8x1xf32>
      %30 = arith.mulf %24, %24 : vector<8x1xf32>
      %31 = arith.subf %29, %30 : vector<8x1xf32>
      %c0_22 = arith.constant 0 : index
      %c0_23 = arith.constant 0 : index
      %32 = vector.load %arg3[%c0_22, %c0_23] : memref<1x128xf32, #tpu.memory_space<vmem>>, vector<1x128xf32>
      %cst_24 = arith.constant 9.99999974E-6 : f32
      %33 = vector.broadcast %cst_24 : f32 to vector<8x1xf32>
      %34 = arith.addf %31, %33 : vector<8x1xf32>
      %35 = math.rsqrt %34 : vector<8x1xf32>
      %36 = vector.broadcast %32 : vector<1x128xf32> to vector<8x128xf32>
      %37 = vector.broadcast %35 : vector<8x1xf32> to vector<8x128xf32>
      %38 = arith.mulf %36, %37 : vector<8x128xf32>
      %c0_25 = arith.constant 0 : index
      %c0_26 = arith.constant 0 : index
      %39 = vector.load %arg4[%c0_25, %c0_26] : memref<1x128xf32, #tpu.memory_space<vmem>>, vector<1x128xf32>
      %40 = vector.broadcast %24 : vector<8x1xf32> to vector<8x128xf32>
      %41 = arith.mulf %40, %38 : vector<8x128xf32>
      %42 = vector.broadcast %39 : vector<1x128xf32> to vector<8x128xf32>
      %43 = arith.subf %42, %41 : vector<8x128xf32>
      %44 = arith.mulf %20, %38 : vector<8x128xf32>
      %45 = arith.addf %44, %43 : vector<8x128xf32>
      %46 = arith.truncf %45 : vector<8x128xf32> to vector<8x128xbf16>
      %c0_27 = arith.constant 0 : index
      %c0_28 = arith.constant 0 : index
      %47 = vector.load %arg10[%c0_27, %c0_28] : memref<8x128xbf16, #tpu.memory_space<vmem>>, vector<8x128xbf16>
      tpu.vector_store %arg10[%c0_27, %c0_28], %46 {strides = array<i32>} : memref<8x128xbf16, #tpu.memory_space<vmem>>, vector<8x128xbf16>,
      %cst_29 = arith.constant 0.000000e+00 : f32
      %48 = vector.broadcast %cst_29 : f32 to vector<8x128xf32>
      %c0_30 = arith.constant 0 : index
      %c0_31 = arith.constant 0 : index
      %49 = vector.load %arg11[%c0_30, %c0_31] : memref<8x128xf32, #tpu.memory_space<vmem>>, vector<8x128xf32>
      tpu.vector_store %arg11[%c0_30, %c0_31], %48 {strides = array<i32>} : memref<8x128xf32, #tpu.memory_space<vmem>>, vector<8x128xf32>,
    } else {
    }
    %c0 = arith.constant 0 : index
    %c0_1 = arith.constant 0 : index
    %3 = vector.load %arg10[%c0, %c0_1] : memref<8x128xbf16, #tpu.memory_space<vmem>>, vector<8x128xbf16>
    %c0_2 = arith.constant 0 : index
    %c0_3 = arith.constant 0 : index
    %4 = vector.load %arg11[%c0_2, %c0_3] : memref<8x128xf32, #tpu.memory_space<vmem>>, vector<8x128xf32>
    %c0_4 = arith.constant 0 : index
    %c0_5 = arith.constant 0 : index
    %5 = vector.load %arg5[%c0_4, %c0_5] : memref<128x128xbf16, #tpu.memory_space<vmem>>, vector<128x128xbf16>
    %c0_6 = arith.constant 0 : index
    %c0_7 = arith.constant 0 : index
    %6 = vector.load %arg6[%c0_6, %c0_7] : memref<1x128xf32, #tpu.memory_space<vmem>>, vector<1x128xf32>
    %c0_8 = arith.constant 0 : index
    %c0_9 = arith.constant 0 : index
    %7 = vector.load %arg7[%c0_8, %c0_9] : memref<128x128xbf16, #tpu.memory_space<vmem>>, vector<128x128xbf16>
    %cst = arith.constant dense<0.000000e+00> : vector<8x128xf32>
    %8 = tpu.matmul %3, %5, %cst {dimension_numbers = #tpu.dot_dimension_numbers<[1], [0], [0], [1], [0, 0, 1, 1], [], []>} : vector<8x128xbf16>, vector<128x128xbf16>, vector<8x128xf32> -> vector<8x128xf32>
    %9 = vector.broadcast %6 : vector<1x128xf32> to vector<8x128xf32>
    %10 = arith.addf %8, %9 : vector<8x128xf32>
    %cst_10 = arith.constant 0.000000e+00 : f32
    %11 = vector.broadcast %cst_10 : f32 to vector<8x128xf32>
    %12 = arith.maximumf %10, %11 : vector<8x128xf32>
    %13 = arith.truncf %12 : vector<8x128xf32> to vector<8x128xbf16>
    %cst_11 = arith.constant dense<0.000000e+00> : vector<8x128xf32>
    %14 = tpu.matmul %13, %7, %cst_11 {dimension_numbers = #tpu.dot_dimension_numbers<[1], [0], [0], [1], [0, 0, 1, 1], [], []>} : vector<8x128xbf16>, vector<128x128xbf16>, vector<8x128xf32> -> vector<8x128xf32>
    %15 = arith.addf %4, %14 : vector<8x128xf32>
    %c0_12 = arith.constant 0 : index
    %c0_13 = arith.constant 0 : index
    %16 = vector.load %arg11[%c0_12, %c0_13] : memref<8x128xf32, #tpu.memory_space<vmem>>, vector<8x128xf32>
    tpu.vector_store %arg11[%c0_12, %c0_13], %15 {strides = array<i32>} : memref<8x128xf32, #tpu.memory_space<vmem>>, vector<8x128xf32>,
    %c0_i32_14 = arith.constant 0 : i32
    %17 = arith.cmpi eq, %arg1, %c0_i32_14 : i32
    %18 = arith.extui %17 : i1 to i32
    %c0_i32_15 = arith.constant 0 : i32
    %19 = arith.cmpi ne, %18, %c0_i32_15 : i32
    scf.if %19 {
      %c0_16 = arith.constant 0 : index
      %c0_17 = arith.constant 0 : index
      %20 = vector.load %arg11[%c0_16, %c0_17] : memref<8x128xf32, #tpu.memory_space<vmem>>, vector<8x128xf32>
      %c0_18 = arith.constant 0 : index
      %c0_19 = arith.constant 0 : index
      %21 = vector.load %arg8[%c0_18, %c0_19] : memref<1x128xf32, #tpu.memory_space<vmem>>, vector<1x128xf32>
      %22 = vector.broadcast %21 : vector<1x128xf32> to vector<8x128xf32>
      %23 = arith.addf %20, %22 : vector<8x128xf32>
      %c0_20 = arith.constant 0 : index
      %c0_21 = arith.constant 0 : index
      %24 = vector.load %arg2[%c0_20, %c0_21] : memref<8x128xf32, #tpu.memory_space<vmem>>, vector<8x128xf32>
      %25 = arith.addf %23, %24 : vector<8x128xf32>
      %c0_22 = arith.constant 0 : index
      %c0_23 = arith.constant 0 : index
      %26 = vector.load %arg9[%c0_22, %c0_23] : memref<8x128xf32, #tpu.memory_space<vmem>>, vector<8x128xf32>
      tpu.vector_store %arg9[%c0_22, %c0_23], %25 {strides = array<i32>} : memref<8x128xf32, #tpu.memory_space<vmem>>, vector<8x128xf32>,
    } else {
    }
    return
  }
  func.func @transform_0(%arg0: i32, %arg1: i32) -> (i32, i32) {
    %c0_i32 = arith.constant 0 : i32
    %c0_i32_0 = arith.constant 0 : i32
    return %arg0, %c0_i32 : i32, i32
  }
  func.func @transform_1(%arg0: i32, %arg1: i32) -> (i32, i32) {
    %c0_i32 = arith.constant 0 : i32
    %c0_i32_0 = arith.constant 0 : i32
    %c0_i32_1 = arith.constant 0 : i32
    return %c0_i32, %c0_i32_0 : i32, i32
  }
  func.func @transform_2(%arg0: i32, %arg1: i32) -> (i32, i32) {
    %c0_i32 = arith.constant 0 : i32
    %c0_i32_0 = arith.constant 0 : i32
    %c0_i32_1 = arith.constant 0 : i32
    return %c0_i32, %c0_i32_0 : i32, i32
  }
  func.func @transform_3(%arg0: i32, %arg1: i32) -> (i32, i32) {
    %c0_i32 = arith.constant 0 : i32
    %c0_i32_0 = arith.constant 0 : i32
    return %c0_i32, %arg1 : i32, i32
  }
  func.func @transform_4(%arg0: i32, %arg1: i32) -> (i32, i32) {
    %c0_i32 = arith.constant 0 : i32
    %c0_i32_0 = arith.constant 0 : i32
    return %c0_i32, %arg1 : i32, i32
  }
  func.func @transform_5(%arg0: i32, %arg1: i32) -> (i32, i32) {
    %c0_i32 = arith.constant 0 : i32
    %c0_i32_0 = arith.constant 0 : i32
    return %arg1, %c0_i32 : i32, i32
  }
  func.func @transform_6(%arg0: i32, %arg1: i32) -> (i32, i32) {
    %c0_i32 = arith.constant 0 : i32
    %c0_i32_0 = arith.constant 0 : i32
    %c0_i32_1 = arith.constant 0 : i32
    return %c0_i32, %c0_i32_0 : i32, i32
  }
  func.func @transform_7(%arg0: i32, %arg1: i32) -> (i32, i32) {
    %c0_i32 = arith.constant 0 : i32
    %c0_i32_0 = arith.constant 0 : i32
    return %arg0, %c0_i32 : i32, i32
  }
}

module attributes {stable_mosaic.version = 11 : i64} {
  func.func @kernel(%arg0: i32, %arg1: i32, %arg2: memref<8x128xf32, #tpu.memory_space<vmem>>, %arg3: memref<1x128xf32, #tpu.memory_space<vmem>>, %arg4: memref<1x128xf32, #tpu.memory_space<vmem>>, %arg5: memref<128x128xbf16, #tpu.memory_space<vmem>>, %arg6: memref<1x128xf32, #tpu.memory_space<vmem>>, %arg7: memref<128x128xbf16, #tpu.memory_space<vmem>>, %arg8: memref<1x128xf32, #tpu.memory_space<vmem>>, %arg9: memref<8x128xf32, #tpu.memory_space<vmem>>, %arg10: memref<8x128xbf16, #tpu.memory_space<vmem>>, %arg11: memref<8x128xf32, #tpu.memory_space<vmem>>) attributes {dimension_semantics = [#tpu.dimension_semantics<parallel>, #tpu.dimension_semantics<arbitrary>], iteration_bounds = array<i64: 1, 1>, scalar_prefetch = 0 : i64, scratch_operands = 2 : i64, tpu.core_type = #tpu.core_type<tc>, window_params = [{transform_indices = @transform_0, window_bounds = array<i64: 8, 128>}, {pipeline_mode = #tpu.pipeline_mode<synchronous>, transform_indices = @transform_1, window_bounds = array<i64: 1, 128>}, {pipeline_mode = #tpu.pipeline_mode<synchronous>, transform_indices = @transform_2, window_bounds = array<i64: 1, 128>}, {transform_indices = @transform_3, window_bounds = array<i64: 128, 128>}, {transform_indices = @transform_4, window_bounds = array<i64: 1, 128>}, {transform_indices = @transform_5, window_bounds = array<i64: 128, 128>}, {pipeline_mode = #tpu.pipeline_mode<synchronous>, transform_indices = @transform_6, window_bounds = array<i64: 1, 128>}, {transform_indices = @transform_7, window_bounds = array<i64: 8, 128>}]} {
    %c0_i32 = arith.constant 0 : i32
    %0 = arith.cmpi eq, %arg1, %c0_i32 : i32
    %1 = arith.extui %0 : i1 to i32
    %c0_i32_0 = arith.constant 0 : i32
    %2 = arith.cmpi ne, %1, %c0_i32_0 : i32
    scf.if %2 {
      %c0_16 = arith.constant 0 : index
      %c0_17 = arith.constant 0 : index
      %20 = vector.load %arg2[%c0_16, %c0_17] : memref<8x128xf32, #tpu.memory_space<vmem>>, vector<8x128xf32>
      %cst_18 = arith.constant dense<0.000000e+00> : vector<8xf32>
      %21 = vector.multi_reduction <add>, %20, %cst_18 [1] : vector<8x128xf32> to vector<8xf32>
      %22 = vector.shape_cast %21 : vector<8xf32> to vector<8x1xf32>
      %cst_19 = arith.constant 1.250000e-01 : f32
      %23 = vector.broadcast %cst_19 : f32 to vector<8x1xf32>
      %24 = arith.mulf %22, %23 : vector<8x1xf32>
      %25 = arith.mulf %20, %20 : vector<8x128xf32>
      %cst_20 = arith.constant dense<0.000000e+00> : vector<8xf32>
      %26 = vector.multi_reduction <add>, %25, %cst_20 [1] : vector<8x128xf32> to vector<8xf32>
      %27 = vector.shape_cast %26 : vector<8xf32> to vector<8x1xf32>
      %cst_21 = arith.constant 1.250000e-01 : f32
      %28 = vector.broadcast %cst_21 : f32 to vector<8x1xf32>
      %29 = arith.mulf %27, %28 : vector<8x1xf32>
      %30 = arith.mulf %24, %24 : vector<8x1xf32>
      %31 = arith.subf %29, %30 : vector<8x1xf32>
      %c0_22 = arith.constant 0 : index
      %c0_23 = arith.constant 0 : index
      %32 = vector.load %arg3[%c0_22, %c0_23] : memref<1x128xf32, #tpu.memory_space<vmem>>, vector<1x128xf32>
      %cst_24 = arith.constant 9.99999974E-6 : f32
      %33 = vector.broadcast %cst_24 : f32 to vector<8x1xf32>
      %34 = arith.addf %31, %33 : vector<8x1xf32>
      %35 = math.rsqrt %34 : vector<8x1xf32>
      %36 = vector.broadcast %32 : vector<1x128xf32> to vector<8x128xf32>
      %37 = vector.broadcast %35 : vector<8x1xf32> to vector<8x128xf32>
      %38 = arith.mulf %36, %37 : vector<8x128xf32>
      %c0_25 = arith.constant 0 : index
      %c0_26 = arith.constant 0 : index
      %39 = vector.load %arg4[%c0_25, %c0_26] : memref<1x128xf32, #tpu.memory_space<vmem>>, vector<1x128xf32>
      %40 = vector.broadcast %24 : vector<8x1xf32> to vector<8x128xf32>
      %41 = arith.mulf %40, %38 : vector<8x128xf32>
      %42 = vector.broadcast %39 : vector<1x128xf32> to vector<8x128xf32>
      %43 = arith.subf %42, %41 : vector<8x128xf32>
      %44 = arith.mulf %20, %38 : vector<8x128xf32>
      %45 = arith.addf %44, %43 : vector<8x128xf32>
      %46 = arith.truncf %45 : vector<8x128xf32> to vector<8x128xbf16>
      %c0_27 = arith.constant 0 : index
      %c0_28 = arith.constant 0 : index
      %47 = vector.load %arg10[%c0_27, %c0_28] : memref<8x128xbf16, #tpu.memory_space<vmem>>, vector<8x128xbf16>
      tpu.vector_store %arg10[%c0_27, %c0_28], %46 {strides = array<i32>} : memref<8x128xbf16, #tpu.memory_space<vmem>>, vector<8x128xbf16>,
      %cst_29 = arith.constant 0.000000e+00 : f32
      %48 = vector.broadcast %cst_29 : f32 to vector<8x128xf32>
      %c0_30 = arith.constant 0 : index
      %c0_31 = arith.constant 0 : index
      %49 = vector.load %arg11[%c0_30, %c0_31] : memref<8x128xf32, #tpu.memory_space<vmem>>, vector<8x128xf32>
      tpu.vector_store %arg11[%c0_30, %c0_31], %48 {strides = array<i32>} : memref<8x128xf32, #tpu.memory_space<vmem>>, vector<8x128xf32>,
    } else {
    }
    %c0 = arith.constant 0 : index
    %c0_1 = arith.constant 0 : index
    %3 = vector.load %arg10[%c0, %c0_1] : memref<8x128xbf16, #tpu.memory_space<vmem>>, vector<8x128xbf16>
    %c0_2 = arith.constant 0 : index
    %c0_3 = arith.constant 0 : index
    %4 = vector.load %arg11[%c0_2, %c0_3] : memref<8x128xf32, #tpu.memory_space<vmem>>, vector<8x128xf32>
    %c0_4 = arith.constant 0 : index
    %c0_5 = arith.constant 0 : index
    %5 = vector.load %arg5[%c0_4, %c0_5] : memref<128x128xbf16, #tpu.memory_space<vmem>>, vector<128x128xbf16>
    %c0_6 = arith.constant 0 : index
    %c0_7 = arith.constant 0 : index
    %6 = vector.load %arg6[%c0_6, %c0_7] : memref<1x128xf32, #tpu.memory_space<vmem>>, vector<1x128xf32>
    %c0_8 = arith.constant 0 : index
    %c0_9 = arith.constant 0 : index
    %7 = vector.load %arg7[%c0_8, %c0_9] : memref<128x128xbf16, #tpu.memory_space<vmem>>, vector<128x128xbf16>
    %cst = arith.constant dense<0.000000e+00> : vector<8x128xf32>
    %8 = tpu.matmul %3, %5, %cst {dimension_numbers = #tpu.dot_dimension_numbers<[1], [0], [0], [1], [0, 0, 1, 1], [], []>} : vector<8x128xbf16>, vector<128x128xbf16>, vector<8x128xf32> -> vector<8x128xf32>
    %9 = vector.broadcast %6 : vector<1x128xf32> to vector<8x128xf32>
    %10 = arith.addf %8, %9 : vector<8x128xf32>
    %cst_10 = arith.constant 0.000000e+00 : f32
    %11 = vector.broadcast %cst_10 : f32 to vector<8x128xf32>
    %12 = arith.maximumf %10, %11 : vector<8x128xf32>
    %13 = arith.truncf %12 : vector<8x128xf32> to vector<8x128xbf16>
    %cst_11 = arith.constant dense<0.000000e+00> : vector<8x128xf32>
    %14 = tpu.matmul %13, %7, %cst_11 {dimension_numbers = #tpu.dot_dimension_numbers<[1], [0], [0], [1], [0, 0, 1, 1], [], []>} : vector<8x128xbf16>, vector<128x128xbf16>, vector<8x128xf32> -> vector<8x128xf32>
    %15 = arith.addf %4, %14 : vector<8x128xf32>
    %c0_12 = arith.constant 0 : index
    %c0_13 = arith.constant 0 : index
    %16 = vector.load %arg11[%c0_12, %c0_13] : memref<8x128xf32, #tpu.memory_space<vmem>>, vector<8x128xf32>
    tpu.vector_store %arg11[%c0_12, %c0_13], %15 {strides = array<i32>} : memref<8x128xf32, #tpu.memory_space<vmem>>, vector<8x128xf32>,
    %c0_i32_14 = arith.constant 0 : i32
    %17 = arith.cmpi eq, %arg1, %c0_i32_14 : i32
    %18 = arith.extui %17 : i1 to i32
    %c0_i32_15 = arith.constant 0 : i32
    %19 = arith.cmpi ne, %18, %c0_i32_15 : i32
    scf.if %19 {
      %c0_16 = arith.constant 0 : index
      %c0_17 = arith.constant 0 : index
      %20 = vector.load %arg11[%c0_16, %c0_17] : memref<8x128xf32, #tpu.memory_space<vmem>>, vector<8x128xf32>
      %c0_18 = arith.constant 0 : index
      %c0_19 = arith.constant 0 : index
      %21 = vector.load %arg8[%c0_18, %c0_19] : memref<1x128xf32, #tpu.memory_space<vmem>>, vector<1x128xf32>
      %22 = vector.broadcast %21 : vector<1x128xf32> to vector<8x128xf32>
      %23 = arith.addf %20, %22 : vector<8x128xf32>
      %c0_20 = arith.constant 0 : index
      %c0_21 = arith.constant 0 : index
      %24 = vector.load %arg2[%c0_20, %c0_21] : memref<8x128xf32, #tpu.memory_space<vmem>>, vector<8x128xf32>
      %25 = arith.addf %23, %24 : vector<8x128xf32>
      %c0_22 = arith.constant 0 : index
      %c0_23 = arith.constant 0 : index
      %26 = vector.load %arg9[%c0_22, %c0_23] : memref<8x128xf32, #tpu.memory_space<vmem>>, vector<8x128xf32>
      tpu.vector_store %arg9[%c0_22, %c0_23], %25 {strides = array<i32>} : memref<8x128xf32, #tpu.memory_space<vmem>>, vector<8x128xf32>,
    } else {
    }
    return
  }
  func.func @transform_0(%arg0: i32, %arg1: i32) -> (i32, i32) {
    %c0_i32 = arith.constant 0 : i32
    %c0_i32_0 = arith.constant 0 : i32
    return %arg0, %c0_i32 : i32, i32
  }
  func.func @transform_1(%arg0: i32, %arg1: i32) -> (i32, i32) {
    %c0_i32 = arith.constant 0 : i32
    %c0_i32_0 = arith.constant 0 : i32
    %c0_i32_1 = arith.constant 0 : i32
    return %c0_i32, %c0_i32_0 : i32, i32
  }
  func.func @transform_2(%arg0: i32, %arg1: i32) -> (i32, i32) {
    %c0_i32 = arith.constant 0 : i32
    %c0_i32_0 = arith.constant 0 : i32
    %c0_i32_1 = arith.constant 0 : i32
    return %c0_i32, %c0_i32_0 : i32, i32
  }
  func.func @transform_3(%arg0: i32, %arg1: i32) -> (i32, i32) {
    %c0_i32 = arith.constant 0 : i32
    %c0_i32_0 = arith.constant 0 : i32
    return %c0_i32, %arg1 : i32, i32
  }
  func.func @transform_4(%arg0: i32, %arg1: i32) -> (i32, i32) {
    %c0_i32 = arith.constant 0 : i32
    %c0_i32_0 = arith.constant 0 : i32
    return %c0_i32, %arg1 : i32, i32
  }
  func.func @transform_5(%arg0: i32, %arg1: i32) -> (i32, i32) {
    %c0_i32 = arith.constant 0 : i32
    %c0_i32_0 = arith.constant 0 : i32
    return %arg1, %c0_i32 : i32, i32
  }
  func.func @transform_6(%arg0: i32, %arg1: i32) -> (i32, i32) {
    %c0_i32 = arith.constant 0 : i32
    %c0_i32_0 = arith.constant 0 : i32
    %c0_i32_1 = arith.constant 0 : i32
    return %c0_i32, %c0_i32_0 : i32, i32
  }
  func.func @transform_7(%arg0: i32, %arg1: i32) -> (i32, i32) {
    %c0_i32 = arith.constant 0 : i32
    %c0_i32_0 = arith.constant 0 : i32
    return %arg0, %c0_i32 : i32, i32
  }
}

</mosaic_0001>

<llo_original>
// kernel: tpu_custom_call.1
$region0: #{tpu_custom_call.1}
  #allocation0 [shape = 'u32[]', space=smem, size = 0x4, offset = 0x4, fixed_abs, tag = 'smem constant byte address 0x4 - core index']
  #allocation1 [shape = 'u32[144,128]{1,0:T(1,128)}', space=vmem, size = 0x12000, scoped, tag = 'internal scratch']
  #allocation2 [shape = 'bf16[8,128]{1,0:T(8,128)(2,1)}', space=vmem, size = 0x800, scoped, tag = 'scratch operand']
  #allocation3 [shape = 'f32[8,128]{1,0:T(8,128)}', space=vmem, size = 0x1000, scoped, tag = 'scratch operand']
  %s0 = inlined_call_operand.hbm [shape: f32[8,128], index: 0, kind: input, shape index: {}]
  %s1 = inlined_call_operand.vmem [shape: f32[1,128], index: 1, kind: input, shape index: {}]
  %s2 = inlined_call_operand.vmem [shape: f32[1,128], index: 2, kind: input, shape index: {}]
  %s3 = inlined_call_operand.hbm [shape: bf16[128,128], index: 3, kind: input, shape index: {}]
  %s4 = inlined_call_operand.vmem [shape: f32[1,128], index: 4, kind: input, shape index: {}]
  %s5 = inlined_call_operand.hbm [shape: bf16[128,128], index: 5, kind: input, shape index: {}]
  %s6 = inlined_call_operand.vmem [shape: f32[1,128], index: 6, kind: input, shape index: {}]
  %s7 = inlined_call_operand.hbm [shape: f32[8,128], index: 7, kind: output, shape index: {}]
  %s8 = sld [smem:[#allocation0]]
  $region58: #{tpu_custom_call.1} parent=0
    _
  %s10 = ssub.s32 1, %s8
  %s11 = scalar_select 0, %s10, %s8
  $region1: #{tpu_custom_call.1} parent=0
    #allocation4 [shape = 'u8[4096]{0}', space=vmem, size = 0x1000, scoped, tag = 'input window, operand 0, single buffered']
    #allocation5 [shape = 's32[1]{0}', space=sflag, size = 0x4, scoped, tag = 'scoped memory for tpu_custom_call.1']
    #allocation6 [shape = 's32[1]{0}', space=sflag, size = 0x4, scoped, tag = 'scoped memory for tpu_custom_call.1']
    #allocation7 [shape = 'u8[32768]{0}', space=vmem, size = 0x8000, scoped, tag = 'input window, operand 3, single buffered']
    #allocation8 [shape = 's32[1]{0}', space=sflag, size = 0x4, scoped, tag = 'scoped memory for tpu_custom_call.1']
    #allocation9 [shape = 'u8[32768]{0}', space=vmem, size = 0x8000, scoped, tag = 'input window, operand 5, single buffered']
    #allocation10 [shape = 'u8[4096]{0}', space=vmem, size = 0x1000, scoped, tag = 'output window, operand 0, single buffered']
    %12 = vsyncpa [#allocation5], 0
    %13 = vsyncpa [#allocation8], 0
    %14 = vsyncpa [#allocation6], 0
    // Predicated region
    $region2: #{tpu_custom_call.1} parent=1 // pred_check
      _
    $region3: #{tpu_custom_call.1} parent=1 // pred_check_branch
      %16 = sbr.rel (0) target = $region5
    $region4: #{tpu_custom_call.1} parent=1 // pred_region
      %s18 = ssub.s32 128, 128
      %19 = vsyncadd [#allocation5], %s18
      %s21 = sshll.u32 [#allocation4], 4
      %s22 = int_to_ptr.vmem [resolvable:$true] %s21
      %24 = dma.hbm_to_vmem [thread:$0]  %s0, 128, %s22, [#allocation5]
    $region5: #{tpu_custom_call.1} parent=1 // pred_fallthru
      _
    // Predicated region
    $region6: #{tpu_custom_call.1} parent=1 // pred_check
      _
    $region7: #{tpu_custom_call.1} parent=1 // pred_check_branch
      %26 = sbr.rel (0) target = $region9
    $region8: #{tpu_custom_call.1} parent=1 // pred_region
      _
    $region9: #{tpu_custom_call.1} parent=1 // pred_fallthru
      _
    // Predicated region
    $region10: #{tpu_custom_call.1} parent=1 // pred_check
      _
    $region11: #{tpu_custom_call.1} parent=1 // pred_check_branch
      %28 = sbr.rel (0) target = $region13
    $region12: #{tpu_custom_call.1} parent=1 // pred_region
      _
    $region13: #{tpu_custom_call.1} parent=1 // pred_fallthru
      _
    // Predicated region
    $region14: #{tpu_custom_call.1} parent=1 // pred_check
      _
    $region15: #{tpu_custom_call.1} parent=1 // pred_check_branch
      %30 = sbr.rel (0) target = $region17
    $region16: #{tpu_custom_call.1} parent=1 // pred_region
      %s32 = ssub.s32 1024, 1024
      %33 = vsyncadd [#allocation8], %s32
      %s34 = sshll.u32 [#allocation7], 4
      %s35 = int_to_ptr.vmem [resolvable:$true] %s34
      %40 = dma.hbm_to_vmem [thread:$0]  %s3, 1024, %s35, [#allocation8], 64, 64, 4
    $region17: #{tpu_custom_call.1} parent=1 // pred_fallthru
      _
    // Predicated region
    $region18: #{tpu_custom_call.1} parent=1 // pred_check
      _
    $region19: #{tpu_custom_call.1} parent=1 // pred_check_branch
      %42 = sbr.rel (0) target = $region21
    $region20: #{tpu_custom_call.1} parent=1 // pred_region
      _
    $region21: #{tpu_custom_call.1} parent=1 // pred_fallthru
      _
    // Predicated region
    $region22: #{tpu_custom_call.1} parent=1 // pred_check
      _
    $region23: #{tpu_custom_call.1} parent=1 // pred_check_branch
      %44 = sbr.rel (0) target = $region25
    $region24: #{tpu_custom_call.1} parent=1 // pred_region
      %s46 = ssub.s32 1024, 1024
      %47 = vsyncadd [#allocation8], %s46
      %s48 = sshll.u32 [#allocation9], 4
      %s49 = int_to_ptr.vmem [resolvable:$true] %s48
      %54 = dma.hbm_to_vmem [thread:$0]  %s5, 1024, %s49, [#allocation8], 64, 64, 4
    $region25: #{tpu_custom_call.1} parent=1 // pred_fallthru
      _
    // Predicated region
    $region26: #{tpu_custom_call.1} parent=1 // pred_check
      _
    $region27: #{tpu_custom_call.1} parent=1 // pred_check_branch
      %56 = sbr.rel (0) target = $region29
    $region28: #{tpu_custom_call.1} parent=1 // pred_region
      _
    $region29: #{tpu_custom_call.1} parent=1 // pred_fallthru
      _
    // Predicated region
    $region30: #{tpu_custom_call.1} parent=1 // pred_check
      _
    $region31: #{tpu_custom_call.1} parent=1 // pred_check_branch
      %58 = sbr.rel (0) target = $region33
    $region32: #{tpu_custom_call.1} parent=1 // pred_region
      %59 = dma.done [#allocation5], 128
    $region33: #{tpu_custom_call.1} parent=1 // pred_fallthru
      _
    // Predicated region
    $region34: #{tpu_custom_call.1} parent=1 // pred_check
      _
    $region35: #{tpu_custom_call.1} parent=1 // pred_check_branch
      %61 = sbr.rel (0) target = $region37
    $region36: #{tpu_custom_call.1} parent=1 // pred_region
      %62 = dma.done [#allocation8], 1024
    $region37: #{tpu_custom_call.1} parent=1 // pred_fallthru
      _
    // Predicated region
    $region38: #{tpu_custom_call.1} parent=1 // pred_check
      _
    $region39: #{tpu_custom_call.1} parent=1 // pred_check_branch
      %64 = sbr.rel (0) target = $region41
    $region40: #{tpu_custom_call.1} parent=1 // pred_region
      %65 = dma.done [#allocation8], 1024
    $region41: #{tpu_custom_call.1} parent=1 // pred_fallthru
      _
    %p67 = scmp.eq.s32.totalorder 0, 0
    // Predicated region
    $region42: #{tpu_custom_call.1} parent=1 // pred_check
      %p68 = pneg %p67
    $region43: #{tpu_custom_call.1} parent=1 // pred_check_branch
      %70 = sbr.rel (%p68) target = $region45
    $region44: #{tpu_custom_call.1} parent=1 // pred_region
      %v71 = vld [vmem:[#allocation4] sm:$0xff]
      %72 = vadd.xlane.f32.xlu0 %v71
      %v73 = vpop.xlane.xlu0 %72
      %v74 = vmul.f32 %v73, 0.125
      %v75 = vmul.f32 %v71, %v71
      %76 = vadd.xlane.f32.xlu0 %v75
      %v77 = vpop.xlane.xlu0 %76
      %v78 = vmul.f32 %v77, 0.125
      %v79 = vmul.f32 %v74, %v74
      %v80 = vsub.f32 %v78, %v79
      %v81 = vld [vmem:[%s1] sm:$0x1]
      %v82 = vadd.f32 %v80, 1e-05
      %v83 = vrsqrt.pop %v82
      %v85 = vlaneseq
      %v86 = vshrl.u32 %v85, 7
      %v87 = vsub.s32 0, %v86
      %v88 = vrot.slane %v81, %v87
      %v90 = vmul.f32 %v88, %v83
      %v91 = vld [vmem:[%s2] sm:$0x1]
      %v92 = vmul.f32 %v74, %v90
      %v94 = vlaneseq
      %v95 = vshrl.u32 %v94, 7
      %v96 = vsub.s32 0, %v95
      %v97 = vrot.slane %v91, %v96
      %v99 = vsub.f32 %v97, %v92
      %v100 = vmul.f32 %v71, %v90
      %v101 = vadd.f32 %v100, %v99
      %v102 = vpack.c.bf16 %v101, %v101
      %103 = vst [vmem:[#allocation2] sm:$0xf] %v102
      %104 = vst [vmem:[#allocation3] sm:$0xff] 0.0
    $region45: #{tpu_custom_call.1} parent=1 // pred_fallthru
      _
    %v105 = vld [vmem:[#allocation2] sm:$0xf]
    %v106 = vld [vmem:[#allocation3] sm:$0xff]
    %v107 = vld [vmem:[#allocation7] sm:$0xf]
    %v108 = vld [vmem:[#allocation7 + $0x4] sm:$0xf]
    %v109 = vld [vmem:[#allocation7 + $0x8] sm:$0xf]
    %v110 = vld [vmem:[#allocation7 + $0xc] sm:$0xf]
    %v111 = vld [vmem:[#allocation7 + $0x10] sm:$0xf]
    %v112 = vld [vmem:[#allocation7 + $0x14] sm:$0xf]
    %v113 = vld [vmem:[#allocation7 + $0x18] sm:$0xf]
    %v114 = vld [vmem:[#allocation7 + $0x1c] sm:$0xf]
    %v115 = vld [vmem:[#allocation7 + $0x20] sm:$0xf]
    %v116 = vld [vmem:[#allocation7 + $0x24] sm:$0xf]
    %v117 = vld [vmem:[#allocation7 + $0x28] sm:$0xf]
    %v118 = vld [vmem:[#allocation7 + $0x2c] sm:$0xf]
    %v119 = vld [vmem:[#allocation7 + $0x30] sm:$0xf]
    %v120 = vld [vmem:[#allocation7 + $0x34] sm:$0xf]
    %v121 = vld [vmem:[#allocation7 + $0x38] sm:$0xf]
    %v122 = vld [vmem:[#allocation7 + $0x3c] sm:$0xf]
    %v123 = vld [vmem:[%s4] sm:$0x1]
    %v124 = vld [vmem:[#allocation9] sm:$0xf]
    %v125 = vld [vmem:[#allocation9 + $0x4] sm:$0xf]
    %v126 = vld [vmem:[#allocation9 + $0x8] sm:$0xf]
    %v127 = vld [vmem:[#allocation9 + $0xc] sm:$0xf]
    %v128 = vld [vmem:[#allocation9 + $0x10] sm:$0xf]
    %v129 = vld [vmem:[#allocation9 + $0x14] sm:$0xf]
    %v130 = vld [vmem:[#allocation9 + $0x18] sm:$0xf]
    %v131 = vld [vmem:[#allocation9 + $0x1c] sm:$0xf]
    %v132 = vld [vmem:[#allocation9 + $0x20] sm:$0xf]
    %v133 = vld [vmem:[#allocation9 + $0x24] sm:$0xf]
    %v134 = vld [vmem:[#allocation9 + $0x28] sm:$0xf]
    %v135 = vld [vmem:[#allocation9 + $0x2c] sm:$0xf]
    %v136 = vld [vmem:[#allocation9 + $0x30] sm:$0xf]
    %v137 = vld [vmem:[#allocation9 + $0x34] sm:$0xf]
    %v138 = vld [vmem:[#allocation9 + $0x38] sm:$0xf]
    %v139 = vld [vmem:[#allocation9 + $0x3c] sm:$0xf]
    %v141 = vlaneseq
    %v142 = vshrl.u32 %v141, 7
    %v143 = vsub.s32 0, %v142
    %v144 = vrot.slane %v123, %v143
    %v162 = vunpack.c.l.b16 %v107
    %v163 = vunpack.c.l.b16 %v108
    %v164 = vunpack.c.l.b16 %v109
    %v165 = vunpack.c.l.b16 %v110
    %v166 = vunpack.c.l.b16 %v111
    %v167 = vunpack.c.l.b16 %v112
    %v168 = vunpack.c.l.b16 %v113
    %v169 = vunpack.c.l.b16 %v114
    %v170 = vunpack.c.l.b16 %v115
    %v171 = vunpack.c.l.b16 %v116
    %v172 = vunpack.c.l.b16 %v117
    %v173 = vunpack.c.l.b16 %v118
    %v174 = vunpack.c.l.b16 %v119
    %v175 = vunpack.c.l.b16 %v120
    %v176 = vunpack.c.l.b16 %v121
    %v177 = vunpack.c.l.b16 %v122
    %v178 = vpack.c.b16 %v163, %v162
    %v179 = vpack.c.b16 %v165, %v164
    %v180 = vpack.c.b16 %v167, %v166
    %v181 = vpack.c.b16 %v169, %v168
    %v182 = vpack.c.b16 %v171, %v170
    %v183 = vpack.c.b16 %v173, %v172
    %v184 = vpack.c.b16 %v175, %v174
    %v185 = vpack.c.b16 %v177, %v176
    %194 = vmatprep.subr.bf16.mxu0 0
    %195 = vmatpush1.bf16.msra.mxu0 %v185
    %196 = vmatprep.subr.bf16.mxu0 0
    %197 = vmatpush1.bf16.msra.mxu0 %v184
    %198 = vmatprep.subr.bf16.mxu0 0
    %199 = vmatpush1.bf16.msra.mxu0 %v183
    %200 = vmatprep.subr.bf16.mxu0 0
    %201 = vmatpush1.bf16.msra.mxu0 %v182
    %202 = vmatprep.subr.bf16.mxu0 0
    %203 = vmatpush1.bf16.msra.mxu0 %v181
    %204 = vmatprep.subr.bf16.mxu0 0
    %205 = vmatpush1.bf16.msra.mxu0 %v180
    %206 = vmatprep.subr.bf16.mxu0 0
    %207 = vmatpush1.bf16.msra.mxu0 %v179
    %208 = vmatprep.subr.bf16.mxu0 0
    %209 = vmatpush1.bf16.msra.mxu0 %v178
    %210 = vmatprep.subr.bf16.mxu0 0
    %211 = vmatpush2.bf16.msra.mxu0 0
    %212 = vmatprep.subr.bf16.mxu0 0
    %213 = vmatpush2.bf16.msra.mxu0 0
    %214 = vmatprep.subr.bf16.mxu0 0
    %215 = vmatpush2.bf16.msra.mxu0 0
    %216 = vmatprep.subr.bf16.mxu0 0
    %217 = vmatpush2.bf16.msra.mxu0 0
    %218 = vmatprep.subr.bf16.mxu0 0
    %219 = vmatpush2.bf16.msra.mxu0 0
    %220 = vmatprep.subr.bf16.mxu0 0
    %221 = vmatpush2.bf16.msra.mxu0 0
    %222 = vmatprep.subr.bf16.mxu0 0
    %223 = vmatpush2.bf16.msra.mxu0 0
    %224 = vmatprep.subr.bf16.mxu0 0
    %225 = vmatpush2.bf16.msra.mxu0 0
    %226 = vmatprep.mubr.bf16.mxu0 0
    %227 = vmatmul.mubr.bf16.gmra.mxu0 %v105
    %v228 = vpop.f32.mrf.mxu0
    %v229 = vadd.f32 %v144, %v228
    %v230 = vpop.f32.mrf.mxu0
    %v231 = vpop.f32.mrf.mxu0
    %v232 = vpop.f32.mrf.mxu0
    %233 = vdwg.mxu0
    %v234 = vmax.f32 %v229, 0.0
    %v235 = vpack.c.bf16 %v234, %v234
    %v252 = vunpack.c.l.b16 %v124
    %v253 = vunpack.c.l.b16 %v125
    %v254 = vunpack.c.l.b16 %v126
    %v255 = vunpack.c.l.b16 %v127
    %v256 = vunpack.c.l.b16 %v128
    %v257 = vunpack.c.l.b16 %v129
    %v258 = vunpack.c.l.b16 %v130
    %v259 = vunpack.c.l.b16 %v131
    %v260 = vunpack.c.l.b16 %v132
    %v261 = vunpack.c.l.b16 %v133
    %v262 = vunpack.c.l.b16 %v134
    %v263 = vunpack.c.l.b16 %v135
    %v264 = vunpack.c.l.b16 %v136
    %v265 = vunpack.c.l.b16 %v137
    %v266 = vunpack.c.l.b16 %v138
    %v267 = vunpack.c.l.b16 %v139
    %v268 = vpack.c.b16 %v253, %v252
    %v269 = vpack.c.b16 %v255, %v254
    %v270 = vpack.c.b16 %v257, %v256
    %v271 = vpack.c.b16 %v259, %v258
    %v272 = vpack.c.b16 %v261, %v260
    %v273 = vpack.c.b16 %v263, %v262
    %v274 = vpack.c.b16 %v265, %v264
    %v275 = vpack.c.b16 %v267, %v266
    %284 = vmatprep.subr.bf16.mxu0 0
    %285 = vmatpush1.bf16.msra.mxu0 %v275
    %286 = vmatprep.subr.bf16.mxu0 0
    %287 = vmatpush1.bf16.msra.mxu0 %v274
    %288 = vmatprep.subr.bf16.mxu0 0
    %289 = vmatpush1.bf16.msra.mxu0 %v273
    %290 = vmatprep.subr.bf16.mxu0 0
    %291 = vmatpush1.bf16.msra.mxu0 %v272
    %292 = vmatprep.subr.bf16.mxu0 0
    %293 = vmatpush1.bf16.msra.mxu0 %v271
    %294 = vmatprep.subr.bf16.mxu0 0
    %295 = vmatpush1.bf16.msra.mxu0 %v270
    %296 = vmatprep.subr.bf16.mxu0 0
    %297 = vmatpush1.bf16.msra.mxu0 %v269
    %298 = vmatprep.subr.bf16.mxu0 0
    %299 = vmatpush1.bf16.msra.mxu0 %v268
    %300 = vmatprep.subr.bf16.mxu0 0
    %301 = vmatpush2.bf16.msra.mxu0 0
    %302 = vmatprep.subr.bf16.mxu0 0
    %303 = vmatpush2.bf16.msra.mxu0 0
    %304 = vmatprep.subr.bf16.mxu0 0
    %305 = vmatpush2.bf16.msra.mxu0 0
    %306 = vmatprep.subr.bf16.mxu0 0
    %307 = vmatpush2.bf16.msra.mxu0 0
    %308 = vmatprep.subr.bf16.mxu0 0
    %309 = vmatpush2.bf16.msra.mxu0 0
    %310 = vmatprep.subr.bf16.mxu0 0
    %311 = vmatpush2.bf16.msra.mxu0 0
    %312 = vmatprep.subr.bf16.mxu0 0
    %313 = vmatpush2.bf16.msra.mxu0 0
    %314 = vmatprep.subr.bf16.mxu0 0
    %315 = vmatpush2.bf16.msra.mxu0 0
    %316 = vmatprep.mubr.bf16.mxu0 0
    %317 = vmatmul.mubr.bf16.gmra.mxu0 %v235
    %v318 = vpop.f32.mrf.mxu0
    %v319 = vadd.f32 0.0, %v318
    %v320 = vpop.f32.mrf.mxu0
    %v321 = vpop.f32.mrf.mxu0
    %v322 = vpop.f32.mrf.mxu0
    %323 = vdwg.mxu0
    %v324 = vadd.f32 %v106, %v319
    %325 = vst [vmem:[#allocation3] sm:$0xff] %v324
    // Predicated region
    $region46: #{tpu_custom_call.1} parent=1 // pred_check
      %p326 = pneg %p67
    $region47: #{tpu_custom_call.1} parent=1 // pred_check_branch
      %328 = sbr.rel (%p326) target = $region49
    $region48: #{tpu_custom_call.1} parent=1 // pred_region
      %v329 = vld [vmem:[#allocation3] sm:$0xff]
      %v330 = vld [vmem:[%s6] sm:$0x1]
      %v332 = vlaneseq
      %v333 = vshrl.u32 %v332, 7
      %v334 = vsub.s32 0, %v333
      %v335 = vrot.slane %v330, %v334
      %v337 = vadd.f32 %v329, %v335
      %v338 = vld [vmem:[#allocation4] sm:$0xff]
      %v339 = vadd.f32 %v337, %v338
      %340 = vst [vmem:[#allocation10] sm:$0xff] %v339
    $region49: #{tpu_custom_call.1} parent=1 // pred_fallthru
      _
    // Predicated region
    $region50: #{tpu_custom_call.1} parent=1 // pred_check
      _
    $region51: #{tpu_custom_call.1} parent=1 // pred_check_branch
      %342 = sbr.rel (0) target = $region53
    $region52: #{tpu_custom_call.1} parent=1 // pred_region
      %s344 = ssub.s32 128, 128
      %345 = vsyncadd [#allocation6], %s344
      %s347 = sshll.u32 [#allocation10], 4
      %s348 = int_to_ptr.vmem [resolvable:$true] %s347
      %350 = dma.vmem_to_hbm [thread:$0]  %s348, 128, %s7, [#allocation6]
    $region53: #{tpu_custom_call.1} parent=1 // pred_fallthru
      _
    // Predicated region
    $region54: #{tpu_custom_call.1} parent=1 // pred_check
      _
    $region55: #{tpu_custom_call.1} parent=1 // pred_check_branch
      %352 = sbr.rel (0) target = $region57
    $region56: #{tpu_custom_call.1} parent=1 // pred_region
      %353 = dma.done [#allocation6], 128
    $region57: #{tpu_custom_call.1} parent=1 // pred_fallthru
      _
    %354 = vsyncpa [#allocation5], 1
    %355 = vsyncpa [#allocation8], 1
    %356 = vsyncpa [#allocation6], 1

// kernel: tpu_custom_call.1
$region0: #{tpu_custom_call.1}
  #allocation0 [shape = 'u32[]', space=smem, size = 0x4, offset = 0x4, fixed_abs, tag = 'smem constant byte address 0x4 - core index']
  #allocation1 [shape = 'u32[144,128]{1,0:T(1,128)}', space=vmem, size = 0x12000, scoped, tag = 'internal scratch']
  #allocation2 [shape = 'bf16[8,128]{1,0:T(8,128)(2,1)}', space=vmem, size = 0x800, scoped, tag = 'scratch operand']
  #allocation3 [shape = 'f32[8,128]{1,0:T(8,128)}', space=vmem, size = 0x1000, scoped, tag = 'scratch operand']
  %s0 = inlined_call_operand.hbm [shape: f32[8,128], index: 0, kind: input, shape index: {}]
  %s1 = inlined_call_operand.vmem [shape: f32[1,128], index: 1, kind: input, shape index: {}]
  %s2 = inlined_call_operand.vmem [shape: f32[1,128], index: 2, kind: input, shape index: {}]
  %s3 = inlined_call_operand.hbm [shape: bf16[128,128], index: 3, kind: input, shape index: {}]
  %s4 = inlined_call_operand.vmem [shape: f32[1,128], index: 4, kind: input, shape index: {}]
  %s5 = inlined_call_operand.hbm [shape: bf16[128,128], index: 5, kind: input, shape index: {}]
  %s6 = inlined_call_operand.vmem [shape: f32[1,128], index: 6, kind: input, shape index: {}]
  %s7 = inlined_call_operand.hbm [shape: f32[8,128], index: 7, kind: output, shape index: {}]
  %s8 = sld [smem:[#allocation0]]
  $region58: #{tpu_custom_call.1} parent=0
    _
  %s10 = ssub.s32 1, %s8
  %s11 = scalar_select 0, %s10, %s8
  $region1: #{tpu_custom_call.1} parent=0
    #allocation4 [shape = 'u8[4096]{0}', space=vmem, size = 0x1000, scoped, tag = 'input window, operand 0, single buffered']
    #allocation5 [shape = 's32[1]{0}', space=sflag, size = 0x4, scoped, tag = 'scoped memory for tpu_custom_call.1']
    #allocation6 [shape = 's32[1]{0}', space=sflag, size = 0x4, scoped, tag = 'scoped memory for tpu_custom_call.1']
    #allocation7 [shape = 'u8[32768]{0}', space=vmem, size = 0x8000, scoped, tag = 'input window, operand 3, single buffered']
    #allocation8 [shape = 's32[1]{0}', space=sflag, size = 0x4, scoped, tag = 'scoped memory for tpu_custom_call.1']
    #allocation9 [shape = 'u8[32768]{0}', space=vmem, size = 0x8000, scoped, tag = 'input window, operand 5, single buffered']
    #allocation10 [shape = 'u8[4096]{0}', space=vmem, size = 0x1000, scoped, tag = 'output window, operand 0, single buffered']
    %12 = vsyncpa [#allocation5], 0
    %13 = vsyncpa [#allocation8], 0
    %14 = vsyncpa [#allocation6], 0
    // Predicated region
    $region2: #{tpu_custom_call.1} parent=1 // pred_check
      _
    $region3: #{tpu_custom_call.1} parent=1 // pred_check_branch
      %16 = sbr.rel (0) target = $region5
    $region4: #{tpu_custom_call.1} parent=1 // pred_region
      %s18 = ssub.s32 128, 128
      %19 = vsyncadd [#allocation5], %s18
      %s21 = sshll.u32 [#allocation4], 4
      %s22 = int_to_ptr.vmem [resolvable:$true] %s21
      %24 = dma.hbm_to_vmem [thread:$0]  %s0, 128, %s22, [#allocation5]
    $region5: #{tpu_custom_call.1} parent=1 // pred_fallthru
      _
    // Predicated region
    $region6: #{tpu_custom_call.1} parent=1 // pred_check
      _
    $region7: #{tpu_custom_call.1} parent=1 // pred_check_branch
      %26 = sbr.rel (0) target = $region9
    $region8: #{tpu_custom_call.1} parent=1 // pred_region
      _
    $region9: #{tpu_custom_call.1} parent=1 // pred_fallthru
      _
    // Predicated region
    $region10: #{tpu_custom_call.1} parent=1 // pred_check
      _
    $region11: #{tpu_custom_call.1} parent=1 // pred_check_branch
      %28 = sbr.rel (0) target = $region13
    $region12: #{tpu_custom_call.1} parent=1 // pred_region
      _
    $region13: #{tpu_custom_call.1} parent=1 // pred_fallthru
      _
    // Predicated region
    $region14: #{tpu_custom_call.1} parent=1 // pred_check
      _
    $region15: #{tpu_custom_call.1} parent=1 // pred_check_branch
      %30 = sbr.rel (0) target = $region17
    $region16: #{tpu_custom_call.1} parent=1 // pred_region
      %s32 = ssub.s32 1024, 1024
      %33 = vsyncadd [#allocation8], %s32
      %s34 = sshll.u32 [#allocation7], 4
      %s35 = int_to_ptr.vmem [resolvable:$true] %s34
      %40 = dma.hbm_to_vmem [thread:$0]  %s3, 1024, %s35, [#allocation8], 64, 64, 4
    $region17: #{tpu_custom_call.1} parent=1 // pred_fallthru
      _
    // Predicated region
    $region18: #{tpu_custom_call.1} parent=1 // pred_check
      _
    $region19: #{tpu_custom_call.1} parent=1 // pred_check_branch
      %42 = sbr.rel (0) target = $region21
    $region20: #{tpu_custom_call.1} parent=1 // pred_region
      _
    $region21: #{tpu_custom_call.1} parent=1 // pred_fallthru
      _
    // Predicated region
    $region22: #{tpu_custom_call.1} parent=1 // pred_check
      _
    $region23: #{tpu_custom_call.1} parent=1 // pred_check_branch
      %44 = sbr.rel (0) target = $region25
    $region24: #{tpu_custom_call.1} parent=1 // pred_region
      %s46 = ssub.s32 1024, 1024
      %47 = vsyncadd [#allocation8], %s46
      %s48 = sshll.u32 [#allocation9], 4
      %s49 = int_to_ptr.vmem [resolvable:$true] %s48
      %54 = dma.hbm_to_vmem [thread:$0]  %s5, 1024, %s49, [#allocation8], 64, 64, 4
    $region25: #{tpu_custom_call.1} parent=1 // pred_fallthru
      _
    // Predicated region
    $region26: #{tpu_custom_call.1} parent=1 // pred_check
      _
    $region27: #{tpu_custom_call.1} parent=1 // pred_check_branch
      %56 = sbr.rel (0) target = $region29
    $region28: #{tpu_custom_call.1} parent=1 // pred_region
      _
    $region29: #{tpu_custom_call.1} parent=1 // pred_fallthru
      _
    // Predicated region
    $region30: #{tpu_custom_call.1} parent=1 // pred_check
      _
    $region31: #{tpu_custom_call.1} parent=1 // pred_check_branch
      %58 = sbr.rel (0) target = $region33
    $region32: #{tpu_custom_call.1} parent=1 // pred_region
      %59 = dma.done [#allocation5], 128
    $region33: #{tpu_custom_call.1} parent=1 // pred_fallthru
      _
    // Predicated region
    $region34: #{tpu_custom_call.1} parent=1 // pred_check
      _
    $region35: #{tpu_custom_call.1} parent=1 // pred_check_branch
      %61 = sbr.rel (0) target = $region37
    $region36: #{tpu_custom_call.1} parent=1 // pred_region
      %62 = dma.done [#allocation8], 1024
    $region37: #{tpu_custom_call.1} parent=1 // pred_fallthru
      _
    // Predicated region
    $region38: #{tpu_custom_call.1} parent=1 // pred_check
      _
    $region39: #{tpu_custom_call.1} parent=1 // pred_check_branch
      %64 = sbr.rel (0) target = $region41
    $region40: #{tpu_custom_call.1} parent=1 // pred_region
      %65 = dma.done [#allocation8], 1024
    $region41: #{tpu_custom_call.1} parent=1 // pred_fallthru
      _
    %p67 = scmp.eq.s32.totalorder 0, 0
    // Predicated region
    $region42: #{tpu_custom_call.1} parent=1 // pred_check
      %p68 = pneg %p67
    $region43: #{tpu_custom_call.1} parent=1 // pred_check_branch
      %70 = sbr.rel (%p68) target = $region45
    $region44: #{tpu_custom_call.1} parent=1 // pred_region
      %v71 = vld [vmem:[#allocation4] sm:$0xff]
      %72 = vadd.xlane.f32.xlu0 %v71
      %v73 = vpop.xlane.xlu0 %72
      %v74 = vmul.f32 %v73, 0.125
      %v75 = vmul.f32 %v71, %v71
      %76 = vadd.xlane.f32.xlu0 %v75
      %v77 = vpop.xlane.xlu0 %76
      %v78 = vmul.f32 %v77, 0.125
      %v79 = vmul.f32 %v74, %v74
      %v80 = vsub.f32 %v78, %v79
      %v81 = vld [vmem:[%s1] sm:$0x1]
      %v82 = vadd.f32 %v80, 1e-05
      %v83 = vrsqrt.pop %v82
      %v85 = vlaneseq
      %v86 = vshrl.u32 %v85, 7
      %v87 = vsub.s32 0, %v86
      %v88 = vrot.slane %v81, %v87
      %v90 = vmul.f32 %v88, %v83
      %v91 = vld [vmem:[%s2] sm:$0x1]
      %v92 = vmul.f32 %v74, %v90
      %v94 = vlaneseq
      %v95 = vshrl.u32 %v94, 7
      %v96 = vsub.s32 0, %v95
      %v97 = vrot.slane %v91, %v96
      %v99 = vsub.f32 %v97, %v92
      %v100 = vmul.f32 %v71, %v90
      %v101 = vadd.f32 %v100, %v99
      %v102 = vpack.c.bf16 %v101, %v101
      %103 = vst [vmem:[#allocation2] sm:$0xf] %v102
      %104 = vst [vmem:[#allocation3] sm:$0xff] 0.0
    $region45: #{tpu_custom_call.1} parent=1 // pred_fallthru
      _
    %v105 = vld [vmem:[#allocation2] sm:$0xf]
    %v106 = vld [vmem:[#allocation3] sm:$0xff]
    %v107 = vld [vmem:[#allocation7] sm:$0xf]
    %v108 = vld [vmem:[#allocation7 + $0x4] sm:$0xf]
    %v109 = vld [vmem:[#allocation7 + $0x8] sm:$0xf]
    %v110 = vld [vmem:[#allocation7 + $0xc] sm:$0xf]
    %v111 = vld [vmem:[#allocation7 + $0x10] sm:$0xf]
    %v112 = vld [vmem:[#allocation7 + $0x14] sm:$0xf]
    %v113 = vld [vmem:[#allocation7 + $0x18] sm:$0xf]
    %v114 = vld [vmem:[#allocation7 + $0x1c] sm:$0xf]
    %v115 = vld [vmem:[#allocation7 + $0x20] sm:$0xf]
    %v116 = vld [vmem:[#allocation7 + $0x24] sm:$0xf]
    %v117 = vld [vmem:[#allocation7 + $0x28] sm:$0xf]
    %v118 = vld [vmem:[#allocation7 + $0x2c] sm:$0xf]
    %v119 = vld [vmem:[#allocation7 + $0x30] sm:$0xf]
    %v120 = vld [vmem:[#allocation7 + $0x34] sm:$0xf]
    %v121 = vld [vmem:[#allocation7 + $0x38] sm:$0xf]
    %v122 = vld [vmem:[#allocation7 + $0x3c] sm:$0xf]
    %v123 = vld [vmem:[%s4] sm:$0x1]
    %v124 = vld [vmem:[#allocation9] sm:$0xf]
    %v125 = vld [vmem:[#allocation9 + $0x4] sm:$0xf]
    %v126 = vld [vmem:[#allocation9 + $0x8] sm:$0xf]
    %v127 = vld [vmem:[#allocation9 + $0xc] sm:$0xf]
    %v128 = vld [vmem:[#allocation9 + $0x10] sm:$0xf]
    %v129 = vld [vmem:[#allocation9 + $0x14] sm:$0xf]
    %v130 = vld [vmem:[#allocation9 + $0x18] sm:$0xf]
    %v131 = vld [vmem:[#allocation9 + $0x1c] sm:$0xf]
    %v132 = vld [vmem:[#allocation9 + $0x20] sm:$0xf]
    %v133 = vld [vmem:[#allocation9 + $0x24] sm:$0xf]
    %v134 = vld [vmem:[#allocation9 + $0x28] sm:$0xf]
    %v135 = vld [vmem:[#allocation9 + $0x2c] sm:$0xf]
    %v136 = vld [vmem:[#allocation9 + $0x30] sm:$0xf]
    %v137 = vld [vmem:[#allocation9 + $0x34] sm:$0xf]
    %v138 = vld [vmem:[#allocation9 + $0x38] sm:$0xf]
    %v139 = vld [vmem:[#allocation9 + $0x3c] sm:$0xf]
    %v141 = vlaneseq
    %v142 = vshrl.u32 %v141, 7
    %v143 = vsub.s32 0, %v142
    %v144 = vrot.slane %v123, %v143
    %v162 = vunpack.c.l.b16 %v107
    %v163 = vunpack.c.l.b16 %v108
    %v164 = vunpack.c.l.b16 %v109
    %v165 = vunpack.c.l.b16 %v110
    %v166 = vunpack.c.l.b16 %v111
    %v167 = vunpack.c.l.b16 %v112
    %v168 = vunpack.c.l.b16 %v113
    %v169 = vunpack.c.l.b16 %v114
    %v170 = vunpack.c.l.b16 %v115
    %v171 = vunpack.c.l.b16 %v116
    %v172 = vunpack.c.l.b16 %v117
    %v173 = vunpack.c.l.b16 %v118
    %v174 = vunpack.c.l.b16 %v119
    %v175 = vunpack.c.l.b16 %v120
    %v176 = vunpack.c.l.b16 %v121
    %v177 = vunpack.c.l.b16 %v122
    %v178 = vpack.c.b16 %v163, %v162
    %v179 = vpack.c.b16 %v165, %v164
    %v180 = vpack.c.b16 %v167, %v166
    %v181 = vpack.c.b16 %v169, %v168
    %v182 = vpack.c.b16 %v171, %v170
    %v183 = vpack.c.b16 %v173, %v172
    %v184 = vpack.c.b16 %v175, %v174
    %v185 = vpack.c.b16 %v177, %v176
    %194 = vmatprep.subr.bf16.mxu0 0
    %195 = vmatpush1.bf16.msra.mxu0 %v185
    %196 = vmatprep.subr.bf16.mxu0 0
    %197 = vmatpush1.bf16.msra.mxu0 %v184
    %198 = vmatprep.subr.bf16.mxu0 0
    %199 = vmatpush1.bf16.msra.mxu0 %v183
    %200 = vmatprep.subr.bf16.mxu0 0
    %201 = vmatpush1.bf16.msra.mxu0 %v182
    %202 = vmatprep.subr.bf16.mxu0 0
    %203 = vmatpush1.bf16.msra.mxu0 %v181
    %204 = vmatprep.subr.bf16.mxu0 0
    %205 = vmatpush1.bf16.msra.mxu0 %v180
    %206 = vmatprep.subr.bf16.mxu0 0
    %207 = vmatpush1.bf16.msra.mxu0 %v179
    %208 = vmatprep.subr.bf16.mxu0 0
    %209 = vmatpush1.bf16.msra.mxu0 %v178
    %210 = vmatprep.subr.bf16.mxu0 0
    %211 = vmatpush2.bf16.msra.mxu0 0
    %212 = vmatprep.subr.bf16.mxu0 0
    %213 = vmatpush2.bf16.msra.mxu0 0
    %214 = vmatprep.subr.bf16.mxu0 0
    %215 = vmatpush2.bf16.msra.mxu0 0
    %216 = vmatprep.subr.bf16.mxu0 0
    %217 = vmatpush2.bf16.msra.mxu0 0
    %218 = vmatprep.subr.bf16.mxu0 0
    %219 = vmatpush2.bf16.msra.mxu0 0
    %220 = vmatprep.subr.bf16.mxu0 0
    %221 = vmatpush2.bf16.msra.mxu0 0
    %222 = vmatprep.subr.bf16.mxu0 0
    %223 = vmatpush2.bf16.msra.mxu0 0
    %224 = vmatprep.subr.bf16.mxu0 0
    %225 = vmatpush2.bf16.msra.mxu0 0
    %226 = vmatprep.mubr.bf16.mxu0 0
    %227 = vmatmul.mubr.bf16.gmra.mxu0 %v105
    %v228 = vpop.f32.mrf.mxu0
    %v229 = vadd.f32 %v144, %v228
    %v230 = vpop.f32.mrf.mxu0
    %v231 = vpop.f32.mrf.mxu0
    %v232 = vpop.f32.mrf.mxu0
    %233 = vdwg.mxu0
    %v234 = vmax.f32 %v229, 0.0
    %v235 = vpack.c.bf16 %v234, %v234
    %v252 = vunpack.c.l.b16 %v124
    %v253 = vunpack.c.l.b16 %v125
    %v254 = vunpack.c.l.b16 %v126
    %v255 = vunpack.c.l.b16 %v127
    %v256 = vunpack.c.l.b16 %v128
    %v257 = vunpack.c.l.b16 %v129
    %v258 = vunpack.c.l.b16 %v130
    %v259 = vunpack.c.l.b16 %v131
    %v260 = vunpack.c.l.b16 %v132
    %v261 = vunpack.c.l.b16 %v133
    %v262 = vunpack.c.l.b16 %v134
    %v263 = vunpack.c.l.b16 %v135
    %v264 = vunpack.c.l.b16 %v136
    %v265 = vunpack.c.l.b16 %v137
    %v266 = vunpack.c.l.b16 %v138
    %v267 = vunpack.c.l.b16 %v139
    %v268 = vpack.c.b16 %v253, %v252
    %v269 = vpack.c.b16 %v255, %v254
    %v270 = vpack.c.b16 %v257, %v256
    %v271 = vpack.c.b16 %v259, %v258
    %v272 = vpack.c.b16 %v261, %v260
    %v273 = vpack.c.b16 %v263, %v262
    %v274 = vpack.c.b16 %v265, %v264
    %v275 = vpack.c.b16 %v267, %v266
    %284 = vmatprep.subr.bf16.mxu0 0
    %285 = vmatpush1.bf16.msra.mxu0 %v275
    %286 = vmatprep.subr.bf16.mxu0 0
    %287 = vmatpush1.bf16.msra.mxu0 %v274
    %288 = vmatprep.subr.bf16.mxu0 0
    %289 = vmatpush1.bf16.msra.mxu0 %v273
    %290 = vmatprep.subr.bf16.mxu0 0
    %291 = vmatpush1.bf16.msra.mxu0 %v272
    %292 = vmatprep.subr.bf16.mxu0 0
    %293 = vmatpush1.bf16.msra.mxu0 %v271
    %294 = vmatprep.subr.bf16.mxu0 0
    %295 = vmatpush1.bf16.msra.mxu0 %v270
    %296 = vmatprep.subr.bf16.mxu0 0
    %297 = vmatpush1.bf16.msra.mxu0 %v269
    %298 = vmatprep.subr.bf16.mxu0 0
    %299 = vmatpush1.bf16.msra.mxu0 %v268
    %300 = vmatprep.subr.bf16.mxu0 0
    %301 = vmatpush2.bf16.msra.mxu0 0
    %302 = vmatprep.subr.bf16.mxu0 0
    %303 = vmatpush2.bf16.msra.mxu0 0
    %304 = vmatprep.subr.bf16.mxu0 0
    %305 = vmatpush2.bf16.msra.mxu0 0
    %306 = vmatprep.subr.bf16.mxu0 0
    %307 = vmatpush2.bf16.msra.mxu0 0
    %308 = vmatprep.subr.bf16.mxu0 0
    %309 = vmatpush2.bf16.msra.mxu0 0
    %310 = vmatprep.subr.bf16.mxu0 0
    %311 = vmatpush2.bf16.msra.mxu0 0
    %312 = vmatprep.subr.bf16.mxu0 0
    %313 = vmatpush2.bf16.msra.mxu0 0
    %314 = vmatprep.subr.bf16.mxu0 0
    %315 = vmatpush2.bf16.msra.mxu0 0
    %316 = vmatprep.mubr.bf16.mxu0 0
    %317 = vmatmul.mubr.bf16.gmra.mxu0 %v235
    %v318 = vpop.f32.mrf.mxu0
    %v319 = vadd.f32 0.0, %v318
    %v320 = vpop.f32.mrf.mxu0
    %v321 = vpop.f32.mrf.mxu0
    %v322 = vpop.f32.mrf.mxu0
    %323 = vdwg.mxu0
    %v324 = vadd.f32 %v106, %v319
    %325 = vst [vmem:[#allocation3] sm:$0xff] %v324
    // Predicated region
    $region46: #{tpu_custom_call.1} parent=1 // pred_check
      %p326 = pneg %p67
    $region47: #{tpu_custom_call.1} parent=1 // pred_check_branch
      %328 = sbr.rel (%p326) target = $region49
    $region48: #{tpu_custom_call.1} parent=1 // pred_region
      %v329 = vld [vmem:[#allocation3] sm:$0xff]
      %v330 = vld [vmem:[%s6] sm:$0x1]
      %v332 = vlaneseq
      %v333 = vshrl.u32 %v332, 7
      %v334 = vsub.s32 0, %v333
      %v335 = vrot.slane %v330, %v334
      %v337 = vadd.f32 %v329, %v335
      %v338 = vld [vmem:[#allocation4] sm:$0xff]
      %v339 = vadd.f32 %v337, %v338
      %340 = vst [vmem:[#allocation10] sm:$0xff] %v339
    $region49: #{tpu_custom_call.1} parent=1 // pred_fallthru
      _
    // Predicated region
    $region50: #{tpu_custom_call.1} parent=1 // pred_check
      _
    $region51: #{tpu_custom_call.1} parent=1 // pred_check_branch
      %342 = sbr.rel (0) target = $region53
    $region52: #{tpu_custom_call.1} parent=1 // pred_region
      %s344 = ssub.s32 128, 128
      %345 = vsyncadd [#allocation6], %s344
      %s347 = sshll.u32 [#allocation10], 4
      %s348 = int_to_ptr.vmem [resolvable:$true] %s347
      %350 = dma.vmem_to_hbm [thread:$0]  %s348, 128, %s7, [#allocation6]
    $region53: #{tpu_custom_call.1} parent=1 // pred_fallthru
      _
    // Predicated region
    $region54: #{tpu_custom_call.1} parent=1 // pred_check
      _
    $region55: #{tpu_custom_call.1} parent=1 // pred_check_branch
      %352 = sbr.rel (0) target = $region57
    $region56: #{tpu_custom_call.1} parent=1 // pred_region
      %353 = dma.done [#allocation6], 128
    $region57: #{tpu_custom_call.1} parent=1 // pred_fallthru
      _
    %354 = vsyncpa [#allocation5], 1
    %355 = vsyncpa [#allocation8], 1
    %356 = vsyncpa [#allocation6], 1

</llo_original>
